<compile_context>
chip_gen: v7x
topology: tpu7x:2x2x1
jax: 0.10.0
libtpu: 0.0.40
codegen_flags: <defaults>
</compile_context>

<pallas_src>
import math

import jax
import jax.numpy as jnp
from jax.experimental import pallas as pl
from jax.experimental.pallas import tpu as pltpu

_LANE_CHOICES = (512, 256, 128)          # preferred lane-dense flat views
_HEADROOM_BYTES = 8 * 1024 * 1024        # VMEM headroom for Mosaic scratch
_MAX_BLOCK_BYTES = 8 * 1024 * 1024       # per-block per-array ceiling
_MIN_BLOCK_BYTES = 1 * 1024 * 1024


def _l1dist_kernel(x1_ref, x2_ref, o_ref):
    # Elementwise hot path: |x1 - x2| on the VPU over the whole VMEM tile.
    o_ref[...] = jnp.abs(x1_ref[...] - x2_ref[...])


def _vmem_capacity_bytes() -> int:
    try:
        return int(pltpu.get_tpu_info().vmem_capacity_bytes)
    except Exception:
        return 64 * 1024 * 1024  # conservative (v7x-sized) if query unavailable


def _target_block_bytes() -> int:
    # 3 arrays x 2 pipeline buffers each must fit VMEM with headroom.
    cap = _vmem_capacity_bytes()
    t = (cap - _HEADROOM_BYTES) // 6
    return int(min(_MAX_BLOCK_BYTES, max(_MIN_BLOCK_BYTES, t)))


def _min_sublane(itemsize: int) -> int:
    # Sublane-packing granularity: 8 rows f32 / 16 bf16 / 32 int8.
    return max(8, 32 // itemsize)


def _round_up(x: int, m: int) -> int:
    return (x + m - 1) // m * m


def l1_dist(x1: jax.Array, x2: jax.Array) -> jax.Array:
    """Pallas implementation of L1Dist.forward: abs(x1 - x2), any shape/dtype."""
    assert x1.shape == x2.shape and x1.dtype == x2.dtype
    orig_shape = x1.shape
    dtype = x1.dtype
    itemsize = jnp.dtype(dtype).itemsize
    n = int(math.prod(orig_shape)) if orig_shape else 1
    if n == 0 or not orig_shape:
        return jnp.abs(x1 - x2)

    min_sub = _min_sublane(itemsize)
    target_bytes = _target_block_bytes()

    # Copy-free 2-D view: lane-dense flat view if numel divides a lane width,
    # otherwise collapse leading dims and keep the full last dim per block.
    lane = None
    for cand in _LANE_CHOICES:
        if n % cand == 0:
            lane = cand
            break
    if lane is None:
        lane = orig_shape[-1] if len(orig_shape) >= 2 else n
    rows = n // lane

    lane_padded = _round_up(lane, 128)   # in-VMEM footprint of one row
    row_bytes = lane_padded * itemsize

    # If even the smallest legal row stripe of a huge misaligned last dim
    # overflows the block budget, let XLA's fused elementwise op handle it
    # (it is already at the HBM roofline for that pathological layout).
    if min(rows, min_sub) * row_bytes > target_bytes:
        # TODO(synk): tile the lane axis for huge non-128-multiple last dims.
        return jnp.abs(x1 - x2)

    if rows <= min_sub:
        tile_rows = rows  # single full-height block (legal: equals array dim)
    else:
        tile_rows = max(min_sub, (target_bytes // row_bytes) // min_sub * min_sub)
        # Ensure >= 2 grid steps so v7x's two TensorCores both get work on the
        # "parallel" axis; negligible cost on single-TC v5e/v6e.
        half_rows = _round_up(int(pl.cdiv(rows, 2)), min_sub)
        tile_rows = min(tile_rows, half_rows, _round_up(rows, min_sub))

    grid_len = int(pl.cdiv(rows, tile_rows))   # ragged last block is masked

    x1v = x1.reshape(rows, lane)   # contiguous reshape: no copy
    x2v = x2.reshape(rows, lane)

    block_bytes = tile_rows * row_bytes
    vmem_cap = _vmem_capacity_bytes()
    vmem_limit = int(min(3 * 2 * block_bytes + (4 << 20), vmem_cap - (2 << 20)))

    spec = pl.BlockSpec((tile_rows, lane), lambda i: (i, 0))

    out = pl.pallas_call(
        _l1dist_kernel,
        out_shape=jax.ShapeDtypeStruct((rows, lane), dtype),
        grid_spec=pltpu.PrefetchScalarGridSpec(
            num_scalar_prefetch=0,
            grid=(grid_len,),
            in_specs=[spec, spec],
            out_specs=spec,
        ),
        compiler_params=pltpu.CompilerParams(
            dimension_semantics=("parallel",),   # megacore split on v7x
            vmem_limit_bytes=vmem_limit,
        ),
        cost_estimate=pl.CostEstimate(
            flops=2 * n,
            transcendentals=0,
            bytes_accessed=3 * n * itemsize,
        ),
    )(x1v, x2v)

    return out.reshape(orig_shape)   # contiguous reshape: no copy


if __name__ == "__main__":
    key = jax.random.PRNGKey(0)
    k1, k2, k3, k4, k5, k6 = jax.random.split(key, 6)

    # Embedding-like shapes: batch=8, hidden=256 (lane-dense flat view, grid=1).
    B, F = 8, 256
    x1 = jax.random.normal(k1, (B, F), dtype=jnp.float32)
    x2 = jax.random.normal(k2, (B, F), dtype=jnp.float32)
    out = jax.block_until_ready(l1_dist(x1, x2))
    ref = jnp.abs(x1 - x2)
    assert out.shape == ref.shape and out.dtype == ref.dtype
    assert jnp.allclose(out, ref), "mismatch vs reference (aligned case)"

    # Ragged shape: numel not a multiple of 128 -> collapsed-view path,
    # full-width block, no padding or slicing anywhere.
    y1 = jax.random.normal(k3, (5, 200), dtype=jnp.float32)
    y2 = jax.random.normal(k4, (5, 200), dtype=jnp.float32)
    out2 = jax.block_until_ready(l1_dist(y1, y2))
    ref2 = jnp.abs(y1 - y2)
    assert out2.shape == ref2.shape and out2.dtype == ref2.dtype
    assert jnp.allclose(out2, ref2), "mismatch vs reference (ragged case)"

    # Multi-block case with a ragged final block (rows not a tile multiple),
    # bf16 to exercise the 16-row sublane granularity.
    z1 = jax.random.normal(k5, (2, 25, 256), dtype=jnp.bfloat16)
    z2 = jax.random.normal(k6, (2, 25, 256), dtype=jnp.bfloat16)
    out3 = jax.block_until_ready(l1_dist(z1, z2))
    ref3 = jnp.abs(z1 - z2)
    assert out3.shape == ref3.shape and out3.dtype == ref3.dtype
    assert jnp.allclose(out3.astype(jnp.float32), ref3.astype(jnp.float32)), \
        "mismatch vs reference (multi-block bf16 case)"

    print("KERNEL_OK")
</pallas_src>

<mosaic_0001>
module attributes {stable_mosaic.version = 11 : i64} {
  func.func @_l1dist_kernel(%arg0: i32, %arg1: memref<4x512xf32, #tpu.memory_space<vmem>>, %arg2: memref<4x512xf32, #tpu.memory_space<vmem>>, %arg3: memref<4x512xf32, #tpu.memory_space<vmem>>) attributes {dimension_semantics = [#tpu.dimension_semantics<parallel>], iteration_bounds = array<i64: 1>, scalar_prefetch = 0 : i64, scratch_operands = 0 : i64, tpu.core_type = #tpu.core_type<tc>, window_params = [{transform_indices = @transform_0, window_bounds = array<i64: 4, 512>}, {transform_indices = @transform_1, window_bounds = array<i64: 4, 512>}, {transform_indices = @transform_2, window_bounds = array<i64: 4, 512>}]} {
    %c0 = arith.constant 0 : index
    %c0_0 = arith.constant 0 : index
    %0 = vector.load %arg1[%c0, %c0_0] : memref<4x512xf32, #tpu.memory_space<vmem>>, vector<4x512xf32>
    %c0_1 = arith.constant 0 : index
    %c0_2 = arith.constant 0 : index
    %1 = vector.load %arg2[%c0_1, %c0_2] : memref<4x512xf32, #tpu.memory_space<vmem>>, vector<4x512xf32>
    %2 = arith.subf %0, %1 : vector<4x512xf32>
    %3 = math.absf %2 : vector<4x512xf32>
    %c0_3 = arith.constant 0 : index
    %c0_4 = arith.constant 0 : index
    %4 = vector.load %arg3[%c0_3, %c0_4] : memref<4x512xf32, #tpu.memory_space<vmem>>, vector<4x512xf32>
    tpu.vector_store %arg3[%c0_3, %c0_4], %3 {strides = array<i32>} : memref<4x512xf32, #tpu.memory_space<vmem>>, vector<4x512xf32>,
    return
  }
  func.func @transform_0(%arg0: i32) -> (i32, i32) {
    %c0_i32 = arith.constant 0 : i32
    %c0_i32_0 = arith.constant 0 : i32
    return %arg0, %c0_i32 : i32, i32
  }
  func.func @transform_1(%arg0: i32) -> (i32, i32) {
    %c0_i32 = arith.constant 0 : i32
    %c0_i32_0 = arith.constant 0 : i32
    return %arg0, %c0_i32 : i32, i32
  }
  func.func @transform_2(%arg0: i32) -> (i32, i32) {
    %c0_i32 = arith.constant 0 : i32
    %c0_i32_0 = arith.constant 0 : i32
    return %arg0, %c0_i32 : i32, i32
  }
}

</mosaic_0001>

<llo_original>
// kernel: tpu_custom_call.1
$region0: #{tpu_custom_call.1}
  #allocation0 [shape = 'u32[]', space=smem, size = 0x4, offset = 0x4, fixed_abs, tag = 'smem constant byte address 0x4 - core index']
  #allocation1 [shape = 'u32[144,128]{1,0:T(1,128)}', space=vmem, size = 0x12000, scoped, tag = 'internal scratch']
  %s0 = inlined_call_operand.hbm [shape: f32[4,512], index: 0, kind: input, shape index: {}]
  %s1 = inlined_call_operand.hbm [shape: f32[4,512], index: 1, kind: input, shape index: {}]
  %s2 = inlined_call_operand.hbm [shape: f32[4,512], index: 2, kind: output, shape index: {}]
  %s3 = sld [smem:[#allocation0]]
  $region26: #{tpu_custom_call.1} parent=0
    _
  %s5 = ssub.s32 1, %s3
  %s6 = scalar_select 0, %s5, %s3
  $region1: #{tpu_custom_call.1} parent=0
    #allocation2 [shape = 'u8[8192]{0}', space=vmem, size = 0x2000, scoped, tag = 'input window, operand 0, single buffered']
    #allocation3 [shape = 's32[1]{0}', space=sflag, size = 0x4, scoped, tag = 'scoped memory for tpu_custom_call.1']
    #allocation4 [shape = 's32[1]{0}', space=sflag, size = 0x4, scoped, tag = 'scoped memory for tpu_custom_call.1']
    #allocation5 [shape = 'u8[8192]{0}', space=vmem, size = 0x2000, scoped, tag = 'input window, operand 1, single buffered']
    #allocation6 [shape = 's32[1]{0}', space=sflag, size = 0x4, scoped, tag = 'scoped memory for tpu_custom_call.1']
    #allocation7 [shape = 'u8[8192]{0}', space=vmem, size = 0x2000, scoped, tag = 'output window, operand 0, single buffered']
    %7 = vsyncpa [#allocation3], 0
    %8 = vsyncpa [#allocation6], 0
    %9 = vsyncpa [#allocation4], 0
    // Predicated region
    $region2: #{tpu_custom_call.1} parent=1 // pred_check
      _
    $region3: #{tpu_custom_call.1} parent=1 // pred_check_branch
      %11 = sbr.rel (0) target = $region5
    $region4: #{tpu_custom_call.1} parent=1 // pred_region
      %s13 = ssub.s32 256, 256
      %14 = vsyncadd [#allocation3], %s13
      %s16 = sshll.u32 [#allocation2], 4
      %s17 = int_to_ptr.vmem [resolvable:$true] %s16
      %19 = dma.hbm_to_vmem [thread:$0]  %s0, 256, %s17, [#allocation3]
    $region5: #{tpu_custom_call.1} parent=1 // pred_fallthru
      _
    // Predicated region
    $region6: #{tpu_custom_call.1} parent=1 // pred_check
      _
    $region7: #{tpu_custom_call.1} parent=1 // pred_check_branch
      %21 = sbr.rel (0) target = $region9
    $region8: #{tpu_custom_call.1} parent=1 // pred_region
      %s23 = ssub.s32 256, 256
      %24 = vsyncadd [#allocation6], %s23
      %s26 = sshll.u32 [#allocation5], 4
      %s27 = int_to_ptr.vmem [resolvable:$true] %s26
      %29 = dma.hbm_to_vmem [thread:$0]  %s1, 256, %s27, [#allocation6]
    $region9: #{tpu_custom_call.1} parent=1 // pred_fallthru
      _
    // Predicated region
    $region10: #{tpu_custom_call.1} parent=1 // pred_check
      _
    $region11: #{tpu_custom_call.1} parent=1 // pred_check_branch
      %31 = sbr.rel (0) target = $region13
    $region12: #{tpu_custom_call.1} parent=1 // pred_region
      %32 = dma.done [#allocation3], 256
    $region13: #{tpu_custom_call.1} parent=1 // pred_fallthru
      _
    // Predicated region
    $region14: #{tpu_custom_call.1} parent=1 // pred_check
      _
    $region15: #{tpu_custom_call.1} parent=1 // pred_check_branch
      %34 = sbr.rel (0) target = $region17
    $region16: #{tpu_custom_call.1} parent=1 // pred_region
      %35 = dma.done [#allocation6], 256
    $region17: #{tpu_custom_call.1} parent=1 // pred_fallthru
      _
    %v36 = vld [vmem:[#allocation2] sm:$0xff]
    %v37 = vld [vmem:[#allocation2 + $0x8] sm:$0xff]
    %v38 = vld [vmem:[#allocation5] sm:$0xff]
    %v39 = vld [vmem:[#allocation5 + $0x8] sm:$0xff]
    %v40 = vsub.f32 %v36, %v38
    %v41 = vsub.f32 %v37, %v39
    %v42 = vand.u32 2147483647, %v40
    %v43 = vand.u32 2147483647, %v41
    %44 = vst [vmem:[#allocation7] sm:$0xff] %v42
    %45 = vst [vmem:[#allocation7 + $0x8] sm:$0xff] %v43
    // Predicated region
    $region18: #{tpu_custom_call.1} parent=1 // pred_check
      _
    $region19: #{tpu_custom_call.1} parent=1 // pred_check_branch
      %47 = sbr.rel (0) target = $region21
    $region20: #{tpu_custom_call.1} parent=1 // pred_region
      %s49 = ssub.s32 256, 256
      %50 = vsyncadd [#allocation4], %s49
      %s52 = sshll.u32 [#allocation7], 4
      %s53 = int_to_ptr.vmem [resolvable:$true] %s52
      %55 = dma.vmem_to_hbm [thread:$0]  %s53, 256, %s2, [#allocation4]
    $region21: #{tpu_custom_call.1} parent=1 // pred_fallthru
      _
    // Predicated region
    $region22: #{tpu_custom_call.1} parent=1 // pred_check
      _
    $region23: #{tpu_custom_call.1} parent=1 // pred_check_branch
      %57 = sbr.rel (0) target = $region25
    $region24: #{tpu_custom_call.1} parent=1 // pred_region
      %58 = dma.done [#allocation4], 256
    $region25: #{tpu_custom_call.1} parent=1 // pred_fallthru
      _
    %59 = vsyncpa [#allocation3], 1
    %60 = vsyncpa [#allocation6], 1
    %61 = vsyncpa [#allocation4], 1

</llo_original>
